<compile_context>
chip_gen: v7x
topology: tpu7x:2x2x1
jax: 0.10.0
libtpu: 0.0.40
codegen_flags: <defaults>
</compile_context>

<pallas_src>
import functools

import jax
import jax.numpy as jnp
from jax.experimental import pallas as pl
from jax.experimental.pallas import tpu as pltpu

# ---------------- configuration (small, consistent with the module) ----------
BATCH = 2
SEQ = 8
EMBEDDING_SIZE = 32          # args.embedding_size
HIDDEN_SIZE = 32             # args.hidden_size (must equal embedding for residual)
BLOCK_NUM = 2                # args.block_num
NUM_ITEMS = 50               # args.num_items
PAD_TOKEN = 0                # args.pad_token
NUM_LABELS = 8               # args.num_labels
DROPOUT = 0.1                # args.dropout (identity at inference)
LN_EPS = 1e-8

TOKEN_TILE = 512             # max token-axis tile (multiple of 128, lane-aligned)
LABELS_PAD = -(-NUM_LABELS // 8) * 8   # sublane-pad the label axis to a multiple of 8


# ---------------- Pallas kernel ----------------------------------------------
def dnn_kernel(x_ref, wblk_ref, vecs_ref, wout_t_ref, bout_ref, o_ref, *,
               block_num, ln_eps):
    """Residual Linear/LayerNorm stack + transposed output projection.

    x_ref      : (TM, H)              f32   gathered embeddings for this token tile
    wblk_ref   : (block_num, H, H)    f32   per-block linear weights, (in, out) layout
    vecs_ref   : (3*block_num, H)     f32   packed [bias, gamma, beta] per block
    wout_t_ref : (L_pad8, H)          f32   output projection, transposed + sublane-padded
    bout_ref   : (L_pad8, 1)          f32   output bias as a column
    o_ref      : (L_pad8, TM)         f32   transposed logits (token axis on lanes)
    """
    x = x_ref[...]                                        # (TM, H)
    vecs = vecs_ref[...]                                  # (3*block_num, H)

    # Static Python loop over blocks (block_num is small & compile-time constant).
    for blk in range(block_num):
        w = wblk_ref[blk]                                 # (H, H)
        b = vecs[3 * blk + 0:3 * blk + 1, :]              # (1, H)
        gamma = vecs[3 * blk + 1:3 * blk + 2, :]          # (1, H)
        beta = vecs[3 * blk + 2:3 * blk + 3, :]           # (1, H)

        # Linear
        y = jnp.dot(x, w, preferred_element_type=jnp.float32) + b

        # LayerNorm: centered two-pass variance (matches PyTorch, no cancellation).
        mean = jnp.mean(y, axis=-1, keepdims=True)
        var = jnp.mean((y - mean) * (y - mean), axis=-1, keepdims=True)
        y = (y - mean) * jax.lax.rsqrt(var + ln_eps) * gamma + beta

        # Dropout == identity in eval mode; residual add.
        x = y + x

    # Transposed output projection: logits^T = W_out^T @ x^T -> (L_pad8, TM).
    # Token axis lands on the 128 lanes -> dense, unmasked vst and ~16x less
    # writeback than a (TM, 128) lane-padded layout.
    logits_t = jnp.dot(wout_t_ref[...], x.T, preferred_element_type=jnp.float32)
    o_ref[...] = logits_t + bout_ref[...]                 # (L_pad8,1) broadcast over lanes


def dnn_forward_pallas(x0, w_blocks, vecs, w_out_t, b_out_col, *, tm_max=TOKEN_TILE):
    """x0: (N, H) gathered embeddings.  Returns transposed logits (L_pad8, N_pad)."""
    n, hidden = x0.shape
    block_num = w_blocks.shape[0]
    l_pad = w_out_t.shape[0]

    # Lane-aligned token tile: large enough to amortize per-step overhead,
    # but no bigger than the (128-rounded) problem so toy sizes don't over-pad.
    tm = min(tm_max, pl.cdiv(n, 128) * 128)
    n_pad = pl.cdiv(n, tm) * tm
    x = jnp.pad(x0, ((0, n_pad - n), (0, 0)))             # pad rows -> zero embeddings

    kernel = functools.partial(dnn_kernel, block_num=block_num, ln_eps=LN_EPS)

    out = pl.pallas_call(
        kernel,
        out_shape=jax.ShapeDtypeStruct((l_pad, n_pad), jnp.float32),
        grid=(n_pad // tm,),
        in_specs=[
            pl.BlockSpec((tm, hidden), lambda i: (i, 0)),                    # activations (tiled)
            pl.BlockSpec((block_num, hidden, hidden), lambda i: (0, 0, 0)),  # block weights
            pl.BlockSpec(vecs.shape, lambda i: (0, 0)),                      # packed small vectors
            pl.BlockSpec((l_pad, hidden), lambda i: (0, 0)),                 # W_out^T (padded)
            pl.BlockSpec((l_pad, 1), lambda i: (0, 0)),                      # output bias column
        ],
        out_specs=pl.BlockSpec((l_pad, tm), lambda i: (0, i)),
        compiler_params=pltpu.CompilerParams(
            dimension_semantics=("parallel",)),
    )(x, w_blocks, vecs, w_out_t, b_out_col)
    return out


# ---------------- parameter init (deterministic, synthetic) ------------------
def init_params(key):
    keys = jax.random.split(key, 3 + 2 * BLOCK_NUM)

    # Embedding table: (num_items + 1, E), padding_idx row zeroed (PyTorch semantics).
    emb = 0.02 * jax.random.normal(keys[0], (NUM_ITEMS + 1, EMBEDDING_SIZE), jnp.float32)
    emb = emb.at[PAD_TOKEN].set(0.0)

    # Per-block Linear(H, H) weights/biases (stored as (in, out) = W^T of nn.Linear).
    w_blocks = jnp.stack([
        0.02 * jax.random.normal(keys[1 + i], (HIDDEN_SIZE, HIDDEN_SIZE), jnp.float32)
        for i in range(BLOCK_NUM)
    ])
    b_blocks = jnp.stack([
        0.01 * jax.random.normal(keys[1 + BLOCK_NUM + i], (HIDDEN_SIZE,), jnp.float32)
        for i in range(BLOCK_NUM)
    ])

    # LayerNorm affine params: ones / zeros (PyTorch default init).
    ln_gamma = jnp.ones((BLOCK_NUM, HIDDEN_SIZE), jnp.float32)
    ln_beta = jnp.zeros((BLOCK_NUM, HIDDEN_SIZE), jnp.float32)

    # Output Linear(H, num_labels) as (in, out).
    w_out = 0.02 * jax.random.normal(keys[1 + 2 * BLOCK_NUM],
                                     (HIDDEN_SIZE, NUM_LABELS), jnp.float32)
    b_out = 0.01 * jax.random.normal(keys[2 + 2 * BLOCK_NUM], (NUM_LABELS,), jnp.float32)

    return emb, w_blocks, b_blocks, ln_gamma, ln_beta, w_out, b_out


def pack_kernel_params(params):
    """Pack parameters into the kernel operands (transposed / sublane-padded output)."""
    emb, w_blocks, b_blocks, ln_gamma, ln_beta, w_out, b_out = params

    # Packed small vectors: [bias, gamma, beta] per block, (3*B, H).
    vecs = jnp.zeros((3 * BLOCK_NUM, HIDDEN_SIZE), jnp.float32)
    for blk in range(BLOCK_NUM):
        vecs = vecs.at[3 * blk + 0].set(b_blocks[blk])
        vecs = vecs.at[3 * blk + 1].set(ln_gamma[blk])
        vecs = vecs.at[3 * blk + 2].set(ln_beta[blk])

    # Transposed output projection (labels sublane-padded to a multiple of 8).
    w_out_t = jnp.zeros((LABELS_PAD, HIDDEN_SIZE), jnp.float32).at[:NUM_LABELS].set(w_out.T)
    b_out_col = jnp.zeros((LABELS_PAD, 1), jnp.float32).at[:NUM_LABELS, 0].set(b_out)

    return emb, w_blocks, vecs, w_out_t, b_out_col


# ---------------- full model wrapper ------------------------------------------
@jax.jit
def dnn_model_forward(token_ids, kernel_params):
    emb, w_blocks, vecs, w_out_t, b_out_col = kernel_params
    b, s = token_ids.shape
    n = b * s
    # Embedding row-gather in XLA (tiny op; keeps kernel VMEM independent of vocab).
    x0 = jnp.take(emb, token_ids.reshape(n).astype(jnp.int32), axis=0)   # (N, H)
    logits_t = dnn_forward_pallas(x0, w_blocks, vecs, w_out_t, b_out_col)
    # Un-transpose and drop the sublane/token padding.
    return logits_t[:NUM_LABELS, :n].T.reshape(b, s, NUM_LABELS)


# ---------------- pure-JAX reference (PyTorch eval semantics) ----------------
def dnn_model_reference(token_ids, params):
    emb, w_blocks, b_blocks, ln_gamma, ln_beta, w_out, b_out = params
    x = jnp.take(emb, token_ids, axis=0)
    for blk in range(BLOCK_NUM):
        y = x @ w_blocks[blk] + b_blocks[blk]
        mean = jnp.mean(y, axis=-1, keepdims=True)
        var = jnp.mean((y - mean) ** 2, axis=-1, keepdims=True)
        y = (y - mean) / jnp.sqrt(var + LN_EPS) * ln_gamma[blk] + ln_beta[blk]
        x = y + x   # dropout == identity in eval
    return x @ w_out + b_out


if __name__ == "__main__":
    key = jax.random.PRNGKey(0)
    key_params, key_ids = jax.random.split(key)

    params = init_params(key_params)
    kernel_params = pack_kernel_params(params)
    token_ids = jax.random.randint(key_ids, (BATCH, SEQ), 0, NUM_ITEMS + 1, jnp.int32)

    out = dnn_model_forward(token_ids, kernel_params)
    out = jax.block_until_ready(out)

    ref = dnn_model_reference(token_ids, params)
    assert out.shape == (BATCH, SEQ, NUM_LABELS)
    assert jnp.allclose(out, ref, atol=1e-4, rtol=1e-4), \
        float(jnp.max(jnp.abs(out - ref)))

    print("KERNEL_OK")
</pallas_src>

<mosaic_0001>
module attributes {stable_mosaic.version = 11 : i64} {
  func.func @dnn_kernel(%arg0: i32, %arg1: memref<128x32xf32, #tpu.memory_space<vmem>>, %arg2: memref<2x32x32xf32, #tpu.memory_space<vmem>>, %arg3: memref<6x32xf32, #tpu.memory_space<vmem>>, %arg4: memref<8x32xf32, #tpu.memory_space<vmem>>, %arg5: memref<8x1xf32, #tpu.memory_space<vmem>>, %arg6: memref<8x128xf32, #tpu.memory_space<vmem>>) attributes {dimension_semantics = [#tpu.dimension_semantics<parallel>], iteration_bounds = array<i64: 1>, scalar_prefetch = 0 : i64, scratch_operands = 0 : i64, tpu.core_type = #tpu.core_type<tc>, window_params = [{transform_indices = @transform_0, window_bounds = array<i64: 128, 32>}, {pipeline_mode = #tpu.pipeline_mode<synchronous>, transform_indices = @transform_1, window_bounds = array<i64: 2, 32, 32>}, {pipeline_mode = #tpu.pipeline_mode<synchronous>, transform_indices = @transform_2, window_bounds = array<i64: 6, 32>}, {pipeline_mode = #tpu.pipeline_mode<synchronous>, transform_indices = @transform_3, window_bounds = array<i64: 8, 32>}, {pipeline_mode = #tpu.pipeline_mode<synchronous>, transform_indices = @transform_4, window_bounds = array<i64: 8, 1>}, {transform_indices = @transform_5, window_bounds = array<i64: 8, 128>}]} {
    %c0 = arith.constant 0 : index
    %c0_0 = arith.constant 0 : index
    %0 = vector.load %arg1[%c0, %c0_0] : memref<128x32xf32, #tpu.memory_space<vmem>>, vector<128x32xf32>
    %c0_1 = arith.constant 0 : index
    %c0_2 = arith.constant 0 : index
    %1 = vector.load %arg3[%c0_1, %c0_2] : memref<6x32xf32, #tpu.memory_space<vmem>>, vector<6x32xf32>
    %c0_3 = arith.constant 0 : index
    %c0_4 = arith.constant 0 : index
    %c0_5 = arith.constant 0 : index
    %2 = vector.load %arg2[%c0_3, %c0_4, %c0_5] : memref<2x32x32xf32, #tpu.memory_space<vmem>>, vector<1x32x32xf32>
    %3 = vector.shape_cast %2 : vector<1x32x32xf32> to vector<32x32xf32>
    %4 = vector.extract_strided_slice %1 {offsets = [0, 0], sizes = [1, 32], strides = [1, 1]} : vector<6x32xf32> to vector<1x32xf32>
    %5 = vector.extract_strided_slice %1 {offsets = [1, 0], sizes = [1, 32], strides = [1, 1]} : vector<6x32xf32> to vector<1x32xf32>
    %6 = vector.extract_strided_slice %1 {offsets = [2, 0], sizes = [1, 32], strides = [1, 1]} : vector<6x32xf32> to vector<1x32xf32>
    %cst = arith.constant dense<0.000000e+00> : vector<128x32xf32>
    %7 = tpu.matmul %0, %3, %cst {dimension_numbers = #tpu.dot_dimension_numbers<[1], [0], [0], [1], [0, 0, 1, 1], [], []>} : vector<128x32xf32>, vector<32x32xf32>, vector<128x32xf32> -> vector<128x32xf32>
    %8 = vector.broadcast %4 : vector<1x32xf32> to vector<128x32xf32>
    %9 = arith.addf %7, %8 : vector<128x32xf32>
    %cst_6 = arith.constant dense<0.000000e+00> : vector<128xf32>
    %10 = vector.multi_reduction <add>, %9, %cst_6 [1] : vector<128x32xf32> to vector<128xf32>
    %11 = vector.shape_cast %10 : vector<128xf32> to vector<128x1xf32>
    %cst_7 = arith.constant 3.200000e+01 : f32
    %12 = vector.broadcast %cst_7 : f32 to vector<128x1xf32>
    %13 = arith.divf %11, %12 : vector<128x1xf32>
    %14 = vector.broadcast %13 : vector<128x1xf32> to vector<128x32xf32>
    %15 = arith.subf %9, %14 : vector<128x32xf32>
    %16 = vector.broadcast %13 : vector<128x1xf32> to vector<128x32xf32>
    %17 = arith.subf %9, %16 : vector<128x32xf32>
    %18 = arith.mulf %15, %17 : vector<128x32xf32>
    %cst_8 = arith.constant dense<0.000000e+00> : vector<128xf32>
    %19 = vector.multi_reduction <add>, %18, %cst_8 [1] : vector<128x32xf32> to vector<128xf32>
    %20 = vector.shape_cast %19 : vector<128xf32> to vector<128x1xf32>
    %cst_9 = arith.constant 3.200000e+01 : f32
    %21 = vector.broadcast %cst_9 : f32 to vector<128x1xf32>
    %22 = arith.divf %20, %21 : vector<128x1xf32>
    %23 = vector.broadcast %13 : vector<128x1xf32> to vector<128x32xf32>
    %24 = arith.subf %9, %23 : vector<128x32xf32>
    %cst_10 = arith.constant 9.99999993E-9 : f32
    %25 = vector.broadcast %cst_10 : f32 to vector<128x1xf32>
    %26 = arith.addf %22, %25 : vector<128x1xf32>
    %27 = math.rsqrt %26 : vector<128x1xf32>
    %28 = vector.broadcast %27 : vector<128x1xf32> to vector<128x32xf32>
    %29 = arith.mulf %24, %28 : vector<128x32xf32>
    %30 = vector.broadcast %5 : vector<1x32xf32> to vector<128x32xf32>
    %31 = arith.mulf %29, %30 : vector<128x32xf32>
    %32 = vector.broadcast %6 : vector<1x32xf32> to vector<128x32xf32>
    %33 = arith.addf %31, %32 : vector<128x32xf32>
    %34 = arith.addf %33, %0 : vector<128x32xf32>
    %c1 = arith.constant 1 : index
    %c0_11 = arith.constant 0 : index
    %c0_12 = arith.constant 0 : index
    %35 = vector.load %arg2[%c1, %c0_11, %c0_12] : memref<2x32x32xf32, #tpu.memory_space<vmem>>, vector<1x32x32xf32>
    %36 = vector.shape_cast %35 : vector<1x32x32xf32> to vector<32x32xf32>
    %37 = vector.extract_strided_slice %1 {offsets = [3, 0], sizes = [1, 32], strides = [1, 1]} : vector<6x32xf32> to vector<1x32xf32>
    %38 = vector.extract_strided_slice %1 {offsets = [4, 0], sizes = [1, 32], strides = [1, 1]} : vector<6x32xf32> to vector<1x32xf32>
    %39 = vector.extract_strided_slice %1 {offsets = [5, 0], sizes = [1, 32], strides = [1, 1]} : vector<6x32xf32> to vector<1x32xf32>
    %cst_13 = arith.constant dense<0.000000e+00> : vector<128x32xf32>
    %40 = tpu.matmul %34, %36, %cst_13 {dimension_numbers = #tpu.dot_dimension_numbers<[1], [0], [0], [1], [0, 0, 1, 1], [], []>} : vector<128x32xf32>, vector<32x32xf32>, vector<128x32xf32> -> vector<128x32xf32>
    %41 = vector.broadcast %37 : vector<1x32xf32> to vector<128x32xf32>
    %42 = arith.addf %40, %41 : vector<128x32xf32>
    %cst_14 = arith.constant dense<0.000000e+00> : vector<128xf32>
    %43 = vector.multi_reduction <add>, %42, %cst_14 [1] : vector<128x32xf32> to vector<128xf32>
    %44 = vector.shape_cast %43 : vector<128xf32> to vector<128x1xf32>
    %cst_15 = arith.constant 3.200000e+01 : f32
    %45 = vector.broadcast %cst_15 : f32 to vector<128x1xf32>
    %46 = arith.divf %44, %45 : vector<128x1xf32>
    %47 = vector.broadcast %46 : vector<128x1xf32> to vector<128x32xf32>
    %48 = arith.subf %42, %47 : vector<128x32xf32>
    %49 = vector.broadcast %46 : vector<128x1xf32> to vector<128x32xf32>
    %50 = arith.subf %42, %49 : vector<128x32xf32>
    %51 = arith.mulf %48, %50 : vector<128x32xf32>
    %cst_16 = arith.constant dense<0.000000e+00> : vector<128xf32>
    %52 = vector.multi_reduction <add>, %51, %cst_16 [1] : vector<128x32xf32> to vector<128xf32>
    %53 = vector.shape_cast %52 : vector<128xf32> to vector<128x1xf32>
    %cst_17 = arith.constant 3.200000e+01 : f32
    %54 = vector.broadcast %cst_17 : f32 to vector<128x1xf32>
    %55 = arith.divf %53, %54 : vector<128x1xf32>
    %56 = vector.broadcast %46 : vector<128x1xf32> to vector<128x32xf32>
    %57 = arith.subf %42, %56 : vector<128x32xf32>
    %cst_18 = arith.constant 9.99999993E-9 : f32
    %58 = vector.broadcast %cst_18 : f32 to vector<128x1xf32>
    %59 = arith.addf %55, %58 : vector<128x1xf32>
    %60 = math.rsqrt %59 : vector<128x1xf32>
    %61 = vector.broadcast %60 : vector<128x1xf32> to vector<128x32xf32>
    %62 = arith.mulf %57, %61 : vector<128x32xf32>
    %63 = vector.broadcast %38 : vector<1x32xf32> to vector<128x32xf32>
    %64 = arith.mulf %62, %63 : vector<128x32xf32>
    %65 = vector.broadcast %39 : vector<1x32xf32> to vector<128x32xf32>
    %66 = arith.addf %64, %65 : vector<128x32xf32>
    %67 = arith.addf %66, %34 : vector<128x32xf32>
    %c0_19 = arith.constant 0 : index
    %c0_20 = arith.constant 0 : index
    %68 = vector.load %arg4[%c0_19, %c0_20] : memref<8x32xf32, #tpu.memory_space<vmem>>, vector<8x32xf32>
    %69 = tpu.transpose %67, [1, 0] : vector<128x32xf32> -> vector<32x128xf32>
    %cst_21 = arith.constant dense<0.000000e+00> : vector<8x128xf32>
    %70 = tpu.matmul %68, %69, %cst_21 {dimension_numbers = #tpu.dot_dimension_numbers<[1], [0], [0], [1], [0, 0, 1, 1], [], []>} : vector<8x32xf32>, vector<32x128xf32>, vector<8x128xf32> -> vector<8x128xf32>
    %c0_22 = arith.constant 0 : index
    %c0_23 = arith.constant 0 : index
    %71 = vector.load %arg5[%c0_22, %c0_23] : memref<8x1xf32, #tpu.memory_space<vmem>>, vector<8x1xf32>
    %72 = vector.broadcast %71 : vector<8x1xf32> to vector<8x128xf32>
    %73 = arith.addf %70, %72 : vector<8x128xf32>
    %c0_24 = arith.constant 0 : index
    %c0_25 = arith.constant 0 : index
    %74 = vector.load %arg6[%c0_24, %c0_25] : memref<8x128xf32, #tpu.memory_space<vmem>>, vector<8x128xf32>
    tpu.vector_store %arg6[%c0_24, %c0_25], %73 {strides = array<i32>} : memref<8x128xf32, #tpu.memory_space<vmem>>, vector<8x128xf32>,
    return
  }
  func.func @transform_0(%arg0: i32) -> (i32, i32) {
    %c0_i32 = arith.constant 0 : i32
    %c0_i32_0 = arith.constant 0 : i32
    return %arg0, %c0_i32 : i32, i32
  }
  func.func @transform_1(%arg0: i32) -> (i32, i32, i32) {
    %c0_i32 = arith.constant 0 : i32
    %c0_i32_0 = arith.constant 0 : i32
    %c0_i32_1 = arith.constant 0 : i32
    %c0_i32_2 = arith.constant 0 : i32
    return %c0_i32, %c0_i32_0, %c0_i32_1 : i32, i32, i32
  }
  func.func @transform_2(%arg0: i32) -> (i32, i32) {
    %c0_i32 = arith.constant 0 : i32
    %c0_i32_0 = arith.constant 0 : i32
    %c0_i32_1 = arith.constant 0 : i32
    return %c0_i32, %c0_i32_0 : i32, i32
  }
  func.func @transform_3(%arg0: i32) -> (i32, i32) {
    %c0_i32 = arith.constant 0 : i32
    %c0_i32_0 = arith.constant 0 : i32
    %c0_i32_1 = arith.constant 0 : i32
    return %c0_i32, %c0_i32_0 : i32, i32
  }
  func.func @transform_4(%arg0: i32) -> (i32, i32) {
    %c0_i32 = arith.constant 0 : i32
    %c0_i32_0 = arith.constant 0 : i32
    %c0_i32_1 = arith.constant 0 : i32
    return %c0_i32, %c0_i32_0 : i32, i32
  }
  func.func @transform_5(%arg0: i32) -> (i32, i32) {
    %c0_i32 = arith.constant 0 : i32
    %c0_i32_0 = arith.constant 0 : i32
    return %c0_i32, %arg0 : i32, i32
  }
}

</mosaic_0001>

<llo_original>
// kernel: dnn_model_forward.1
$region0: #{dnn_model_forward.1}
  #allocation0 [shape = 'u32[]', space=smem, size = 0x4, offset = 0x4, fixed_abs, tag = 'smem constant byte address 0x4 - core index']
  #allocation1 [shape = 'u32[144,128]{1,0:T(1,128)}', space=vmem, size = 0x12000, scoped, tag = 'internal scratch']
  %s0 = inlined_call_operand.vmem [shape: f32[128,32], index: 0, kind: input, shape index: {}]
  %s1 = inlined_call_operand.vmem [shape: f32[2,32,32], index: 1, kind: input, shape index: {}]
  %s2 = inlined_call_operand.vmem [shape: f32[6,32], index: 2, kind: input, shape index: {}]
  %s3 = inlined_call_operand.vmem [shape: f32[8,32], index: 3, kind: input, shape index: {}]
  %s4 = inlined_call_operand.vmem [shape: f32[8,1], index: 4, kind: input, shape index: {}]
  %s5 = inlined_call_operand.vmem [shape: f32[8,128], index: 5, kind: output, shape index: {}]
  %s6 = sld [smem:[#allocation0]]
  $region30: #{dnn_model_forward.1} parent=0
    _
  %s8 = ssub.s32 1, %s6
  %s9 = scalar_select 0, %s8, %s6
  // Predicated region
  $region2: #{dnn_model_forward.1} parent=0 // pred_check
    _
  $region3: #{dnn_model_forward.1} parent=0 // pred_check_branch
    %11 = sbr.rel (0) target = $region5
  $region4: #{dnn_model_forward.1} parent=0 // pred_region
    _
  $region5: #{dnn_model_forward.1} parent=0 // pred_fallthru
    _
  // Predicated region
  $region6: #{dnn_model_forward.1} parent=0 // pred_check
    _
  $region7: #{dnn_model_forward.1} parent=0 // pred_check_branch
    %13 = sbr.rel (0) target = $region9
  $region8: #{dnn_model_forward.1} parent=0 // pred_region
    _
  $region9: #{dnn_model_forward.1} parent=0 // pred_fallthru
    _
  // Predicated region
  $region10: #{dnn_model_forward.1} parent=0 // pred_check
    _
  $region11: #{dnn_model_forward.1} parent=0 // pred_check_branch
    %15 = sbr.rel (0) target = $region13
  $region12: #{dnn_model_forward.1} parent=0 // pred_region
    _
  $region13: #{dnn_model_forward.1} parent=0 // pred_fallthru
    _
  // Predicated region
  $region14: #{dnn_model_forward.1} parent=0 // pred_check
    _
  $region15: #{dnn_model_forward.1} parent=0 // pred_check_branch
    %17 = sbr.rel (0) target = $region17
  $region16: #{dnn_model_forward.1} parent=0 // pred_region
    _
  $region17: #{dnn_model_forward.1} parent=0 // pred_fallthru
    _
  // Predicated region
  $region18: #{dnn_model_forward.1} parent=0 // pred_check
    _
  $region19: #{dnn_model_forward.1} parent=0 // pred_check_branch
    %19 = sbr.rel (0) target = $region21
  $region20: #{dnn_model_forward.1} parent=0 // pred_region
    _
  $region21: #{dnn_model_forward.1} parent=0 // pred_fallthru
    _
  %v20 = vld [vmem:[%s0] sm:$0xff]
  %v21 = vld [vmem:[%s0 + $0x8] sm:$0xff]
  %v22 = vld [vmem:[%s0 + $0x10] sm:$0xff]
  %v23 = vld [vmem:[%s0 + $0x18] sm:$0xff]
  %v24 = vld [vmem:[%s0 + $0x20] sm:$0xff]
  %v25 = vld [vmem:[%s0 + $0x28] sm:$0xff]
  %v26 = vld [vmem:[%s0 + $0x30] sm:$0xff]
  %v27 = vld [vmem:[%s0 + $0x38] sm:$0xff]
  %v28 = vld [vmem:[%s0 + $0x40] sm:$0xff]
  %v29 = vld [vmem:[%s0 + $0x48] sm:$0xff]
  %v30 = vld [vmem:[%s0 + $0x50] sm:$0xff]
  %v31 = vld [vmem:[%s0 + $0x58] sm:$0xff]
  %v32 = vld [vmem:[%s0 + $0x60] sm:$0xff]
  %v33 = vld [vmem:[%s0 + $0x68] sm:$0xff]
  %v34 = vld [vmem:[%s0 + $0x70] sm:$0xff]
  %v35 = vld [vmem:[%s0 + $0x78] sm:$0xff]
  %v36 = vld [vmem:[%s2] sm:$0x3f]
  %v37 = vld [vmem:[%s1] sm:$0xff]
  %v38 = vld [vmem:[%s1 + $0x8] sm:$0xff]
  %v39 = vld [vmem:[%s1 + $0x10] sm:$0xff]
  %v40 = vld [vmem:[%s1 + $0x18] sm:$0xff]
  %v41 = vlaneseq
  %v42 = vshrl.u32 %v41, 7
  %v43 = vsub.s32 0, %v42
  %v44 = vrot.slane %v36, %v43
  %vm45 = vcmask 261120
  %v47 = vsel %vm45, %v20, 0
  %v50 = vsel %vm45, %v21, 0
  %v53 = vsel %vm45, %v22, 0
  %v56 = vsel %vm45, %v23, 0
  %v59 = vsel %vm45, %v24, 0
  %v62 = vsel %vm45, %v25, 0
  %v65 = vsel %vm45, %v26, 0
  %v68 = vsel %vm45, %v27, 0
  %v71 = vsel %vm45, %v28, 0
  %v74 = vsel %vm45, %v29, 0
  %v77 = vsel %vm45, %v30, 0
  %v80 = vsel %vm45, %v31, 0
  %v83 = vsel %vm45, %v32, 0
  %v86 = vsel %vm45, %v33, 0
  %v89 = vsel %vm45, %v34, 0
  %v92 = vsel %vm45, %v35, 0
  %94 = vmatprep.subr.mxu0 0.0
  %95 = vmatpush1.msra.mxu0 %v37
  %96 = vmatprep.subr.mxu0 0.0
  %97 = vmatpush1.msra.mxu0 %v38
  %98 = vmatprep.subr.mxu0 0.0
  %99 = vmatpush1.msra.mxu0 %v39
  %100 = vmatprep.subr.mxu0 0.0
  %101 = vmatpush1.msra.mxu0 %v40
  %102 = vmatprep.subr.mxu0 0.0
  %103 = vmatpush1.msra.mxu0 0.0
  %104 = vmatprep.subr.mxu0 0.0
  %105 = vmatpush1.msra.mxu0 0.0
  %106 = vmatprep.subr.mxu0 0.0
  %107 = vmatpush1.msra.mxu0 0.0
  %108 = vmatprep.subr.mxu0 0.0
  %109 = vmatpush1.msra.mxu0 0.0
  %110 = vmatprep.subr.mxu0 0.0
  %111 = vmatpush1.msra.mxu0 0.0
  %112 = vmatprep.subr.mxu0 0.0
  %113 = vmatpush1.msra.mxu0 0.0
  %114 = vmatprep.subr.mxu0 0.0
  %115 = vmatpush1.msra.mxu0 0.0
  %116 = vmatprep.subr.mxu0 0.0
  %117 = vmatpush1.msra.mxu0 0.0
  %118 = vmatprep.subr.mxu0 0.0
  %119 = vmatpush1.msra.mxu0 0.0
  %120 = vmatprep.subr.mxu0 0.0
  %121 = vmatpush1.msra.mxu0 0.0
  %122 = vmatprep.subr.mxu0 0.0
  %123 = vmatpush1.msra.mxu0 0.0
  %124 = vmatprep.subr.mxu0 0.0
  %125 = vmatpush1.msra.mxu0 0.0
  %126 = vmatprep.subr.mxu0 0.0
  %127 = vmatpush1.msra.mxu0 0.0
  %128 = vmatprep.subr.mxu0 0.0
  %129 = vmatpush1.msra.mxu0 0.0
  %130 = vmatprep.subr.mxu0 0.0
  %131 = vmatpush1.msra.mxu0 0.0
  %132 = vmatprep.subr.mxu0 0.0
  %133 = vmatpush1.msra.mxu0 0.0
  %134 = vmatprep.subr.mxu0 0.0
  %135 = vmatpush1.msra.mxu0 0.0
  %136 = vmatprep.subr.mxu0 0.0
  %137 = vmatpush1.msra.mxu0 0.0
  %138 = vmatprep.subr.mxu0 0.0
  %139 = vmatpush1.msra.mxu0 0.0
  %140 = vmatprep.subr.mxu0 0.0
  %141 = vmatpush1.msra.mxu0 0.0
  %142 = vmatprep.subr.mxu0 0.0
  %143 = vmatpush1.msra.mxu0 0.0
  %144 = vmatprep.subr.mxu0 0.0
  %145 = vmatpush1.msra.mxu0 0.0
  %146 = vmatprep.subr.mxu0 0.0
  %147 = vmatpush1.msra.mxu0 0.0
  %148 = vmatprep.subr.mxu0 0.0
  %149 = vmatpush1.msra.mxu0 0.0
  %150 = vmatprep.subr.mxu0 0.0
  %151 = vmatpush1.msra.mxu0 0.0
  %152 = vmatprep.subr.mxu0 0.0
  %153 = vmatpush1.msra.mxu0 0.0
  %154 = vmatprep.subr.mxu0 0.0
  %155 = vmatpush1.msra.mxu0 0.0
  %156 = vmatprep.subr.mxu0 0.0
  %157 = vmatpush1.msra.mxu0 0.0
  %158 = vmatprep.mubr.f32.mxu0 0.0
  %159 = vmatmul.mubr.f32.gmra.mrb[0].mxu0 %v47
  %v160 = vpop.f32.mrb[0].mxu0
  %v161 = vadd.f32 %v44, %v160
  %v162 = vpop.f32.mrb[0].mxu0
  %163 = vmatprep.mubr.f32.mxu0 0.0
  %164 = vmatmul.mubr.f32.gmra.mrb[0].mxu0 %v50
  %v165 = vpop.f32.mrb[0].mxu0
  %v166 = vadd.f32 %v44, %v165
  %v167 = vpop.f32.mrb[0].mxu0
  %168 = vmatprep.mubr.f32.mxu0 0.0
  %169 = vmatmul.mubr.f32.gmra.mrb[0].mxu0 %v53
  %v170 = vpop.f32.mrb[0].mxu0
  %v171 = vadd.f32 %v44, %v170
  %v172 = vpop.f32.mrb[0].mxu0
  %173 = vmatprep.mubr.f32.mxu0 0.0
  %174 = vmatmul.mubr.f32.gmra.mrb[0].mxu0 %v56
  %v175 = vpop.f32.mrb[0].mxu0
  %v176 = vadd.f32 %v44, %v175
  %v177 = vpop.f32.mrb[0].mxu0
  %178 = vmatprep.mubr.f32.mxu0 0.0
  %179 = vmatmul.mubr.f32.gmra.mrb[0].mxu0 %v59
  %v180 = vpop.f32.mrb[0].mxu0
  %v181 = vadd.f32 %v44, %v180
  %v182 = vpop.f32.mrb[0].mxu0
  %183 = vmatprep.mubr.f32.mxu0 0.0
  %184 = vmatmul.mubr.f32.gmra.mrb[0].mxu0 %v62
  %v185 = vpop.f32.mrb[0].mxu0
  %v186 = vadd.f32 %v44, %v185
  %v187 = vpop.f32.mrb[0].mxu0
  %188 = vmatprep.mubr.f32.mxu0 0.0
  %189 = vmatmul.mubr.f32.gmra.mrb[0].mxu0 %v65
  %v190 = vpop.f32.mrb[0].mxu0
  %v191 = vadd.f32 %v44, %v190
  %v192 = vpop.f32.mrb[0].mxu0
  %193 = vmatprep.mubr.f32.mxu0 0.0
  %194 = vmatmul.mubr.f32.gmra.mrb[0].mxu0 %v68
  %v195 = vpop.f32.mrb[0].mxu0
  %v196 = vadd.f32 %v44, %v195
  %v197 = vpop.f32.mrb[0].mxu0
  %198 = vmatprep.mubr.f32.mxu0 0.0
  %199 = vmatmul.mubr.f32.gmra.mrb[0].mxu0 %v71
  %v200 = vpop.f32.mrb[0].mxu0
  %v201 = vadd.f32 %v44, %v200
  %v202 = vpop.f32.mrb[0].mxu0
  %203 = vmatprep.mubr.f32.mxu0 0.0
  %204 = vmatmul.mubr.f32.gmra.mrb[0].mxu0 %v74
  %v205 = vpop.f32.mrb[0].mxu0
  %v206 = vadd.f32 %v44, %v205
  %v207 = vpop.f32.mrb[0].mxu0
  %208 = vmatprep.mubr.f32.mxu0 0.0
  %209 = vmatmul.mubr.f32.gmra.mrb[0].mxu0 %v77
  %v210 = vpop.f32.mrb[0].mxu0
  %v211 = vadd.f32 %v44, %v210
  %v212 = vpop.f32.mrb[0].mxu0
  %213 = vmatprep.mubr.f32.mxu0 0.0
  %214 = vmatmul.mubr.f32.gmra.mrb[0].mxu0 %v80
  %v215 = vpop.f32.mrb[0].mxu0
  %v216 = vadd.f32 %v44, %v215
  %v217 = vpop.f32.mrb[0].mxu0
  %218 = vmatprep.mubr.f32.mxu0 0.0
  %219 = vmatmul.mubr.f32.gmra.mrb[0].mxu0 %v83
  %v220 = vpop.f32.mrb[0].mxu0
  %v221 = vadd.f32 %v44, %v220
  %v222 = vpop.f32.mrb[0].mxu0
  %223 = vmatprep.mubr.f32.mxu0 0.0
  %224 = vmatmul.mubr.f32.gmra.mrb[0].mxu0 %v86
  %v225 = vpop.f32.mrb[0].mxu0
  %v226 = vadd.f32 %v44, %v225
  %v227 = vpop.f32.mrb[0].mxu0
  %228 = vmatprep.mubr.f32.mxu0 0.0
  %229 = vmatmul.mubr.f32.gmra.mrb[0].mxu0 %v89
  %v230 = vpop.f32.mrb[0].mxu0
  %v231 = vadd.f32 %v44, %v230
  %v232 = vpop.f32.mrb[0].mxu0
  %233 = vmatprep.mubr.f32.mxu0 0.0
  %234 = vmatmul.mubr.f32.gmra.mrb[0].mxu0 %v92
  %v235 = vpop.f32.mrb[0].mxu0
  %v236 = vadd.f32 %v44, %v235
  %v237 = vpop.f32.mrb[0].mxu0
  %238 = vdwg.mxu0
  %v239 = vsel %vm45, %v161, 0.0
  %240 = vadd.xlane.f32.xlu0 %v239
  %v241 = vpop.xlane.xlu0 %240
  %v242 = vsel %vm45, %v166, 0.0
  %243 = vadd.xlane.f32.xlu0 %v242
  %v244 = vpop.xlane.xlu0 %243
  %v245 = vsel %vm45, %v171, 0.0
  %246 = vadd.xlane.f32.xlu0 %v245
  %v247 = vpop.xlane.xlu0 %246
  %v248 = vsel %vm45, %v176, 0.0
  %249 = vadd.xlane.f32.xlu0 %v248
  %v250 = vpop.xlane.xlu0 %249
  %v251 = vsel %vm45, %v181, 0.0
  %252 = vadd.xlane.f32.xlu0 %v251
  %v253 = vpop.xlane.xlu0 %252
  %v254 = vsel %vm45, %v186, 0.0
  %255 = vadd.xlane.f32.xlu0 %v254
  %v256 = vpop.xlane.xlu0 %255
  %v257 = vsel %vm45, %v191, 0.0
  %258 = vadd.xlane.f32.xlu0 %v257
  %v259 = vpop.xlane.xlu0 %258
  %v260 = vsel %vm45, %v196, 0.0
  %261 = vadd.xlane.f32.xlu0 %v260
  %v262 = vpop.xlane.xlu0 %261
  %v263 = vsel %vm45, %v201, 0.0
  %264 = vadd.xlane.f32.xlu0 %v263
  %v265 = vpop.xlane.xlu0 %264
  %v266 = vsel %vm45, %v206, 0.0
  %267 = vadd.xlane.f32.xlu0 %v266
  %v268 = vpop.xlane.xlu0 %267
  %v269 = vsel %vm45, %v211, 0.0
  %270 = vadd.xlane.f32.xlu0 %v269
  %v271 = vpop.xlane.xlu0 %270
  %v272 = vsel %vm45, %v216, 0.0
  %273 = vadd.xlane.f32.xlu0 %v272
  %v274 = vpop.xlane.xlu0 %273
  %v275 = vsel %vm45, %v221, 0.0
  %276 = vadd.xlane.f32.xlu0 %v275
  %v277 = vpop.xlane.xlu0 %276
  %v278 = vsel %vm45, %v226, 0.0
  %279 = vadd.xlane.f32.xlu0 %v278
  %v280 = vpop.xlane.xlu0 %279
  %v281 = vsel %vm45, %v231, 0.0
  %282 = vadd.xlane.f32.xlu0 %v281
  %v283 = vpop.xlane.xlu0 %282
  %v284 = vsel %vm45, %v236, 0.0
  %285 = vadd.xlane.f32.xlu0 %v284
  %v286 = vpop.xlane.xlu0 %285
  %v287 = vrcp.pop 32.0
  %v288 = vmul.f32 %v241, %v287
  %v289 = vmul.f32 %v244, %v287
  %v290 = vmul.f32 %v247, %v287
  %v291 = vmul.f32 %v250, %v287
  %v292 = vmul.f32 %v253, %v287
  %v293 = vmul.f32 %v256, %v287
  %v294 = vmul.f32 %v259, %v287
  %v295 = vmul.f32 %v262, %v287
  %v296 = vmul.f32 %v265, %v287
  %v297 = vmul.f32 %v268, %v287
  %v298 = vmul.f32 %v271, %v287
  %v299 = vmul.f32 %v274, %v287
  %v300 = vmul.f32 %v277, %v287
  %v301 = vmul.f32 %v280, %v287
  %v302 = vmul.f32 %v283, %v287
  %v303 = vmul.f32 %v286, %v287
  %v304 = vsub.f32 %v161, %v288
  %v305 = vsub.f32 %v166, %v289
  %v306 = vsub.f32 %v171, %v290
  %v307 = vsub.f32 %v176, %v291
  %v308 = vsub.f32 %v181, %v292
  %v309 = vsub.f32 %v186, %v293
  %v310 = vsub.f32 %v191, %v294
  %v311 = vsub.f32 %v196, %v295
  %v312 = vsub.f32 %v201, %v296
  %v313 = vsub.f32 %v206, %v297
  %v314 = vsub.f32 %v211, %v298
  %v315 = vsub.f32 %v216, %v299
  %v316 = vsub.f32 %v221, %v300
  %v317 = vsub.f32 %v226, %v301
  %v318 = vsub.f32 %v231, %v302
  %v319 = vsub.f32 %v236, %v303
  %v320 = vmul.f32 %v304, %v304
  %v321 = vmul.f32 %v305, %v305
  %v322 = vmul.f32 %v306, %v306
  %v323 = vmul.f32 %v307, %v307
  %v324 = vmul.f32 %v308, %v308
  %v325 = vmul.f32 %v309, %v309
  %v326 = vmul.f32 %v310, %v310
  %v327 = vmul.f32 %v311, %v311
  %v328 = vmul.f32 %v312, %v312
  %v329 = vmul.f32 %v313, %v313
  %v330 = vmul.f32 %v314, %v314
  %v331 = vmul.f32 %v315, %v315
  %v332 = vmul.f32 %v316, %v316
  %v333 = vmul.f32 %v317, %v317
  %v334 = vmul.f32 %v318, %v318
  %v335 = vmul.f32 %v319, %v319
  %v336 = vsel %vm45, %v320, 0.0
  %337 = vadd.xlane.f32.xlu0 %v336
  %v338 = vpop.xlane.xlu0 %337
  %v339 = vsel %vm45, %v321, 0.0
  %340 = vadd.xlane.f32.xlu0 %v339
  %v341 = vpop.xlane.xlu0 %340
  %v342 = vsel %vm45, %v322, 0.0
  %343 = vadd.xlane.f32.xlu0 %v342
  %v344 = vpop.xlane.xlu0 %343
  %v345 = vsel %vm45, %v323, 0.0
  %346 = vadd.xlane.f32.xlu0 %v345
  %v347 = vpop.xlane.xlu0 %346
  %v348 = vsel %vm45, %v324, 0.0
  %349 = vadd.xlane.f32.xlu0 %v348
  %v350 = vpop.xlane.xlu0 %349
  %v351 = vsel %vm45, %v325, 0.0
  %352 = vadd.xlane.f32.xlu0 %v351
  %v353 = vpop.xlane.xlu0 %352
  %v354 = vsel %vm45, %v326, 0.0
  %355 = vadd.xlane.f32.xlu0 %v354
  %v356 = vpop.xlane.xlu0 %355
  %v357 = vsel %vm45, %v327, 0.0
  %358 = vadd.xlane.f32.xlu0 %v357
  %v359 = vpop.xlane.xlu0 %358
  %v360 = vsel %vm45, %v328, 0.0
  %361 = vadd.xlane.f32.xlu0 %v360
  %v362 = vpop.xlane.xlu0 %361
  %v363 = vsel %vm45, %v329, 0.0
  %364 = vadd.xlane.f32.xlu0 %v363
  %v365 = vpop.xlane.xlu0 %364
  %v366 = vsel %vm45, %v330, 0.0
  %367 = vadd.xlane.f32.xlu0 %v366
  %v368 = vpop.xlane.xlu0 %367
  %v369 = vsel %vm45, %v331, 0.0
  %370 = vadd.xlane.f32.xlu0 %v369
  %v371 = vpop.xlane.xlu0 %370
  %v372 = vsel %vm45, %v332, 0.0
  %373 = vadd.xlane.f32.xlu0 %v372
  %v374 = vpop.xlane.xlu0 %373
  %v375 = vsel %vm45, %v333, 0.0
  %376 = vadd.xlane.f32.xlu0 %v375
  %v377 = vpop.xlane.xlu0 %376
  %v378 = vsel %vm45, %v334, 0.0
  %379 = vadd.xlane.f32.xlu0 %v378
  %v380 = vpop.xlane.xlu0 %379
  %v381 = vsel %vm45, %v335, 0.0
  %382 = vadd.xlane.f32.xlu0 %v381
  %v383 = vpop.xlane.xlu0 %382
  %v384 = vmul.f32 %v338, %v287
  %v385 = vmul.f32 %v341, %v287
  %v386 = vmul.f32 %v344, %v287
  %v387 = vmul.f32 %v347, %v287
  %v388 = vmul.f32 %v350, %v287
  %v389 = vmul.f32 %v353, %v287
  %v390 = vmul.f32 %v356, %v287
  %v391 = vmul.f32 %v359, %v287
  %v392 = vmul.f32 %v362, %v287
  %v393 = vmul.f32 %v365, %v287
  %v394 = vmul.f32 %v368, %v287
  %v395 = vmul.f32 %v371, %v287
  %v396 = vmul.f32 %v374, %v287
  %v397 = vmul.f32 %v377, %v287
  %v398 = vmul.f32 %v380, %v287
  %v399 = vmul.f32 %v383, %v287
  %v400 = vadd.f32 %v384, 1e-08
  %v401 = vadd.f32 %v385, 1e-08
  %v402 = vadd.f32 %v386, 1e-08
  %v403 = vadd.f32 %v387, 1e-08
  %v404 = vadd.f32 %v388, 1e-08
  %v405 = vadd.f32 %v389, 1e-08
  %v406 = vadd.f32 %v390, 1e-08
  %v407 = vadd.f32 %v391, 1e-08
  %v408 = vadd.f32 %v392, 1e-08
  %v409 = vadd.f32 %v393, 1e-08
  %v410 = vadd.f32 %v394, 1e-08
  %v411 = vadd.f32 %v395, 1e-08
  %v412 = vadd.f32 %v396, 1e-08
  %v413 = vadd.f32 %v397, 1e-08
  %v414 = vadd.f32 %v398, 1e-08
  %v415 = vadd.f32 %v399, 1e-08
  %v416 = vrsqrt.pop %v400
  %v417 = vrsqrt.pop %v401
  %v418 = vrsqrt.pop %v402
  %v419 = vrsqrt.pop %v403
  %v420 = vrsqrt.pop %v404
  %v421 = vrsqrt.pop %v405
  %v422 = vrsqrt.pop %v406
  %v423 = vrsqrt.pop %v407
  %v424 = vrsqrt.pop %v408
  %v425 = vrsqrt.pop %v409
  %v426 = vrsqrt.pop %v410
  %v427 = vrsqrt.pop %v411
  %v428 = vrsqrt.pop %v412
  %v429 = vrsqrt.pop %v413
  %v430 = vrsqrt.pop %v414
  %v431 = vrsqrt.pop %v415
  %v432 = vmul.f32 %v304, %v416
  %v433 = vmul.f32 %v305, %v417
  %v434 = vmul.f32 %v306, %v418
  %v435 = vmul.f32 %v307, %v419
  %v436 = vmul.f32 %v308, %v420
  %v437 = vmul.f32 %v309, %v421
  %v438 = vmul.f32 %v310, %v422
  %v439 = vmul.f32 %v311, %v423
  %v440 = vmul.f32 %v312, %v424
  %v441 = vmul.f32 %v313, %v425
  %v442 = vmul.f32 %v314, %v426
  %v443 = vmul.f32 %v315, %v427
  %v444 = vmul.f32 %v316, %v428
  %v445 = vmul.f32 %v317, %v429
  %v446 = vmul.f32 %v318, %v430
  %v447 = vmul.f32 %v319, %v431
  %v448 = vlaneseq
  %v449 = vshrl.u32 %v448, 7
  %v450 = vsub.s32 1, %v449
  %v451 = vrot.slane %v36, %v450
  %v452 = vmul.f32 %v432, %v451
  %v453 = vmul.f32 %v433, %v451
  %v454 = vmul.f32 %v434, %v451
  %v455 = vmul.f32 %v435, %v451
  %v456 = vmul.f32 %v436, %v451
  %v457 = vmul.f32 %v437, %v451
  %v458 = vmul.f32 %v438, %v451
  %v459 = vmul.f32 %v439, %v451
  %v460 = vmul.f32 %v440, %v451
  %v461 = vmul.f32 %v441, %v451
  %v462 = vmul.f32 %v442, %v451
  %v463 = vmul.f32 %v443, %v451
  %v464 = vmul.f32 %v444, %v451
  %v465 = vmul.f32 %v445, %v451
  %v466 = vmul.f32 %v446, %v451
  %v467 = vmul.f32 %v447, %v451
  %v468 = vlaneseq
  %v469 = vshrl.u32 %v468, 7
  %v470 = vsub.s32 2, %v469
  %v471 = vrot.slane %v36, %v470
  %v472 = vadd.f32 %v452, %v471
  %v473 = vadd.f32 %v453, %v471
  %v474 = vadd.f32 %v454, %v471
  %v475 = vadd.f32 %v455, %v471
  %v476 = vadd.f32 %v456, %v471
  %v477 = vadd.f32 %v457, %v471
  %v478 = vadd.f32 %v458, %v471
  %v479 = vadd.f32 %v459, %v471
  %v480 = vadd.f32 %v460, %v471
  %v481 = vadd.f32 %v461, %v471
  %v482 = vadd.f32 %v462, %v471
  %v483 = vadd.f32 %v463, %v471
  %v484 = vadd.f32 %v464, %v471
  %v485 = vadd.f32 %v465, %v471
  %v486 = vadd.f32 %v466, %v471
  %v487 = vadd.f32 %v467, %v471
  %v488 = vadd.f32 %v472, %v20
  %v489 = vadd.f32 %v473, %v21
  %v490 = vadd.f32 %v474, %v22
  %v491 = vadd.f32 %v475, %v23
  %v492 = vadd.f32 %v476, %v24
  %v493 = vadd.f32 %v477, %v25
  %v494 = vadd.f32 %v478, %v26
  %v495 = vadd.f32 %v479, %v27
  %v496 = vadd.f32 %v480, %v28
  %v497 = vadd.f32 %v481, %v29
  %v498 = vadd.f32 %v482, %v30
  %v499 = vadd.f32 %v483, %v31
  %v500 = vadd.f32 %v484, %v32
  %v501 = vadd.f32 %v485, %v33
  %v502 = vadd.f32 %v486, %v34
  %v503 = vadd.f32 %v487, %v35
  %s504 = scalar_lea.vmem %s1, 32
  %v505 = vld [vmem:[%s504] sm:$0xff]
  %v506 = vld [vmem:[%s504 + $0x8] sm:$0xff]
  %v507 = vld [vmem:[%s504 + $0x10] sm:$0xff]
  %v508 = vld [vmem:[%s504 + $0x18] sm:$0xff]
  %v509 = vlaneseq
  %v510 = vshrl.u32 %v509, 7
  %v511 = vsub.s32 3, %v510
  %v512 = vrot.slane %v36, %v511
  %v514 = vsel %vm45, %v488, 0
  %v517 = vsel %vm45, %v489, 0
  %v520 = vsel %vm45, %v490, 0
  %v523 = vsel %vm45, %v491, 0
  %v526 = vsel %vm45, %v492, 0
  %v529 = vsel %vm45, %v493, 0
  %v532 = vsel %vm45, %v494, 0
  %v535 = vsel %vm45, %v495, 0
  %v538 = vsel %vm45, %v496, 0
  %v541 = vsel %vm45, %v497, 0
  %v544 = vsel %vm45, %v498, 0
  %v547 = vsel %vm45, %v499, 0
  %v550 = vsel %vm45, %v500, 0
  %v553 = vsel %vm45, %v501, 0
  %v556 = vsel %vm45, %v502, 0
  %v559 = vsel %vm45, %v503, 0
  %561 = vmatprep.subr.mxu0 0.0
  %562 = vmatpush1.msra.mxu0 %v505
  %563 = vmatprep.subr.mxu0 0.0
  %564 = vmatpush1.msra.mxu0 %v506
  %565 = vmatprep.subr.mxu0 0.0
  %566 = vmatpush1.msra.mxu0 %v507
  %567 = vmatprep.subr.mxu0 0.0
  %568 = vmatpush1.msra.mxu0 %v508
  %569 = vmatprep.subr.mxu0 0.0
  %570 = vmatpush1.msra.mxu0 0.0
  %571 = vmatprep.subr.mxu0 0.0
  %572 = vmatpush1.msra.mxu0 0.0
  %573 = vmatprep.subr.mxu0 0.0
  %574 = vmatpush1.msra.mxu0 0.0
  %575 = vmatprep.subr.mxu0 0.0
  %576 = vmatpush1.msra.mxu0 0.0
  %577 = vmatprep.subr.mxu0 0.0
  %578 = vmatpush1.msra.mxu0 0.0
  %579 = vmatprep.subr.mxu0 0.0
  %580 = vmatpush1.msra.mxu0 0.0
  %581 = vmatprep.subr.mxu0 0.0
  %582 = vmatpush1.msra.mxu0 0.0
  %583 = vmatprep.subr.mxu0 0.0
  %584 = vmatpush1.msra.mxu0 0.0
  %585 = vmatprep.subr.mxu0 0.0
  %586 = vmatpush1.msra.mxu0 0.0
  %587 = vmatprep.subr.mxu0 0.0
  %588 = vmatpush1.msra.mxu0 0.0
  %589 = vmatprep.subr.mxu0 0.0
  %590 = vmatpush1.msra.mxu0 0.0
  %591 = vmatprep.subr.mxu0 0.0
  %592 = vmatpush1.msra.mxu0 0.0
  %593 = vmatprep.subr.mxu0 0.0
  %594 = vmatpush1.msra.mxu0 0.0
  %595 = vmatprep.subr.mxu0 0.0
  %596 = vmatpush1.msra.mxu0 0.0
  %597 = vmatprep.subr.mxu0 0.0
  %598 = vmatpush1.msra.mxu0 0.0
  %599 = vmatprep.subr.mxu0 0.0
  %600 = vmatpush1.msra.mxu0 0.0
  %601 = vmatprep.subr.mxu0 0.0
  %602 = vmatpush1.msra.mxu0 0.0
  %603 = vmatprep.subr.mxu0 0.0
  %604 = vmatpush1.msra.mxu0 0.0
  %605 = vmatprep.subr.mxu0 0.0
  %606 = vmatpush1.msra.mxu0 0.0
  %607 = vmatprep.subr.mxu0 0.0
  %608 = vmatpush1.msra.mxu0 0.0
  %609 = vmatprep.subr.mxu0 0.0
  %610 = vmatpush1.msra.mxu0 0.0
  %611 = vmatprep.subr.mxu0 0.0
  %612 = vmatpush1.msra.mxu0 0.0
  %613 = vmatprep.subr.mxu0 0.0
  %614 = vmatpush1.msra.mxu0 0.0
  %615 = vmatprep.subr.mxu0 0.0
  %616 = vmatpush1.msra.mxu0 0.0
  %617 = vmatprep.subr.mxu0 0.0
  %618 = vmatpush1.msra.mxu0 0.0
  %619 = vmatprep.subr.mxu0 0.0
  %620 = vmatpush1.msra.mxu0 0.0
  %621 = vmatprep.subr.mxu0 0.0
  %622 = vmatpush1.msra.mxu0 0.0
  %623 = vmatprep.subr.mxu0 0.0
  %624 = vmatpush1.msra.mxu0 0.0
  %625 = vmatprep.mubr.f32.mxu0 0.0
  %626 = vmatmul.mubr.f32.gmra.mrb[0].mxu0 %v514
  %v627 = vpop.f32.mrb[0].mxu0
  %v628 = vadd.f32 %v512, %v627
  %v629 = vpop.f32.mrb[0].mxu0
  %630 = vmatprep.mubr.f32.mxu0 0.0
  %631 = vmatmul.mubr.f32.gmra.mrb[0].mxu0 %v517
  %v632 = vpop.f32.mrb[0].mxu0
  %v633 = vadd.f32 %v512, %v632
  %v634 = vpop.f32.mrb[0].mxu0
  %635 = vmatprep.mubr.f32.mxu0 0.0
  %636 = vmatmul.mubr.f32.gmra.mrb[0].mxu0 %v520
  %v637 = vpop.f32.mrb[0].mxu0
  %v638 = vadd.f32 %v512, %v637
  %v639 = vpop.f32.mrb[0].mxu0
  %640 = vmatprep.mubr.f32.mxu0 0.0
  %641 = vmatmul.mubr.f32.gmra.mrb[0].mxu0 %v523
  %v642 = vpop.f32.mrb[0].mxu0
  %v643 = vadd.f32 %v512, %v642
  %v644 = vpop.f32.mrb[0].mxu0
  %645 = vmatprep.mubr.f32.mxu0 0.0
  %646 = vmatmul.mubr.f32.gmra.mrb[0].mxu0 %v526
  %v647 = vpop.f32.mrb[0].mxu0
  %v648 = vadd.f32 %v512, %v647
  %v649 = vpop.f32.mrb[0].mxu0
  %650 = vmatprep.mubr.f32.mxu0 0.0
  %651 = vmatmul.mubr.f32.gmra.mrb[0].mxu0 %v529
  %v652 = vpop.f32.mrb[0].mxu0
  %v653 = vadd.f32 %v512, %v652
  %v654 = vpop.f32.mrb[0].mxu0
  %655 = vmatprep.mubr.f32.mxu0 0.0
  %656 = vmatmul.mubr.f32.gmra.mrb[0].mxu0 %v532
  %v657 = vpop.f32.mrb[0].mxu0
  %v658 = vadd.f32 %v512, %v657
  %v659 = vpop.f32.mrb[0].mxu0
  %660 = vmatprep.mubr.f32.mxu0 0.0
  %661 = vmatmul.mubr.f32.gmra.mrb[0].mxu0 %v535
  %v662 = vpop.f32.mrb[0].mxu0
  %v663 = vadd.f32 %v512, %v662
  %v664 = vpop.f32.mrb[0].mxu0
  %665 = vmatprep.mubr.f32.mxu0 0.0
  %666 = vmatmul.mubr.f32.gmra.mrb[0].mxu0 %v538
  %v667 = vpop.f32.mrb[0].mxu0
  %v668 = vadd.f32 %v512, %v667
  %v669 = vpop.f32.mrb[0].mxu0
  %670 = vmatprep.mubr.f32.mxu0 0.0
  %671 = vmatmul.mubr.f32.gmra.mrb[0].mxu0 %v541
  %v672 = vpop.f32.mrb[0].mxu0
  %v673 = vadd.f32 %v512, %v672
  %v674 = vpop.f32.mrb[0].mxu0
  %675 = vmatprep.mubr.f32.mxu0 0.0
  %676 = vmatmul.mubr.f32.gmra.mrb[0].mxu0 %v544
  %v677 = vpop.f32.mrb[0].mxu0
  %v678 = vadd.f32 %v512, %v677
  %v679 = vpop.f32.mrb[0].mxu0
  %680 = vmatprep.mubr.f32.mxu0 0.0
  %681 = vmatmul.mubr.f32.gmra.mrb[0].mxu0 %v547
  %v682 = vpop.f32.mrb[0].mxu0
  %v683 = vadd.f32 %v512, %v682
  %v684 = vpop.f32.mrb[0].mxu0
  %685 = vmatprep.mubr.f32.mxu0 0.0
  %686 = vmatmul.mubr.f32.gmra.mrb[0].mxu0 %v550
  %v687 = vpop.f32.mrb[0].mxu0
  %v688 = vadd.f32 %v512, %v687
  %v689 = vpop.f32.mrb[0].mxu0
  %690 = vmatprep.mubr.f32.mxu0 0.0
  %691 = vmatmul.mubr.f32.gmra.mrb[0].mxu0 %v553
  %v692 = vpop.f32.mrb[0].mxu0
  %v693 = vadd.f32 %v512, %v692
  %v694 = vpop.f32.mrb[0].mxu0
  %695 = vmatprep.mubr.f32.mxu0 0.0
  %696 = vmatmul.mubr.f32.gmra.mrb[0].mxu0 %v556
  %v697 = vpop.f32.mrb[0].mxu0
  %v698 = vadd.f32 %v512, %v697
  %v699 = vpop.f32.mrb[0].mxu0
  %700 = vmatprep.mubr.f32.mxu0 0.0
  %701 = vmatmul.mubr.f32.gmra.mrb[0].mxu0 %v559
  %v702 = vpop.f32.mrb[0].mxu0
  %v703 = vadd.f32 %v512, %v702
  %v704 = vpop.f32.mrb[0].mxu0
  %705 = vdwg.mxu0
  %v706 = vsel %vm45, %v628, 0.0
  %707 = vadd.xlane.f32.xlu0 %v706
  %v708 = vpop.xlane.xlu0 %707
  %v709 = vsel %vm45, %v633, 0.0
  %710 = vadd.xlane.f32.xlu0 %v709
  %v711 = vpop.xlane.xlu0 %710
  %v712 = vsel %vm45, %v638, 0.0
  %713 = vadd.xlane.f32.xlu0 %v712
  %v714 = vpop.xlane.xlu0 %713
  %v715 = vsel %vm45, %v643, 0.0
  %716 = vadd.xlane.f32.xlu0 %v715
  %v717 = vpop.xlane.xlu0 %716
  %v718 = vsel %vm45, %v648, 0.0
  %719 = vadd.xlane.f32.xlu0 %v718
  %v720 = vpop.xlane.xlu0 %719
  %v721 = vsel %vm45, %v653, 0.0
  %722 = vadd.xlane.f32.xlu0 %v721
  %v723 = vpop.xlane.xlu0 %722
  %v724 = vsel %vm45, %v658, 0.0
  %725 = vadd.xlane.f32.xlu0 %v724
  %v726 = vpop.xlane.xlu0 %725
  %v727 = vsel %vm45, %v663, 0.0
  %728 = vadd.xlane.f32.xlu0 %v727
  %v729 = vpop.xlane.xlu0 %728
  %v730 = vsel %vm45, %v668, 0.0
  %731 = vadd.xlane.f32.xlu0 %v730
  %v732 = vpop.xlane.xlu0 %731
  %v733 = vsel %vm45, %v673, 0.0
  %734 = vadd.xlane.f32.xlu0 %v733
  %v735 = vpop.xlane.xlu0 %734
  %v736 = vsel %vm45, %v678, 0.0
  %737 = vadd.xlane.f32.xlu0 %v736
  %v738 = vpop.xlane.xlu0 %737
  %v739 = vsel %vm45, %v683, 0.0
  %740 = vadd.xlane.f32.xlu0 %v739
  %v741 = vpop.xlane.xlu0 %740
  %v742 = vsel %vm45, %v688, 0.0
  %743 = vadd.xlane.f32.xlu0 %v742
  %v744 = vpop.xlane.xlu0 %743
  %v745 = vsel %vm45, %v693, 0.0
  %746 = vadd.xlane.f32.xlu0 %v745
  %v747 = vpop.xlane.xlu0 %746
  %v748 = vsel %vm45, %v698, 0.0
  %749 = vadd.xlane.f32.xlu0 %v748
  %v750 = vpop.xlane.xlu0 %749
  %v751 = vsel %vm45, %v703, 0.0
  %752 = vadd.xlane.f32.xlu0 %v751
  %v753 = vpop.xlane.xlu0 %752
  %v754 = vmul.f32 %v708, %v287
  %v755 = vmul.f32 %v711, %v287
  %v756 = vmul.f32 %v714, %v287
  %v757 = vmul.f32 %v717, %v287
  %v758 = vmul.f32 %v720, %v287
  %v759 = vmul.f32 %v723, %v287
  %v760 = vmul.f32 %v726, %v287
  %v761 = vmul.f32 %v729, %v287
  %v762 = vmul.f32 %v732, %v287
  %v763 = vmul.f32 %v735, %v287
  %v764 = vmul.f32 %v738, %v287
  %v765 = vmul.f32 %v741, %v287
  %v766 = vmul.f32 %v744, %v287
  %v767 = vmul.f32 %v747, %v287
  %v768 = vmul.f32 %v750, %v287
  %v769 = vmul.f32 %v753, %v287
  %v770 = vsub.f32 %v628, %v754
  %v771 = vsub.f32 %v633, %v755
  %v772 = vsub.f32 %v638, %v756
  %v773 = vsub.f32 %v643, %v757
  %v774 = vsub.f32 %v648, %v758
  %v775 = vsub.f32 %v653, %v759
  %v776 = vsub.f32 %v658, %v760
  %v777 = vsub.f32 %v663, %v761
  %v778 = vsub.f32 %v668, %v762
  %v779 = vsub.f32 %v673, %v763
  %v780 = vsub.f32 %v678, %v764
  %v781 = vsub.f32 %v683, %v765
  %v782 = vsub.f32 %v688, %v766
  %v783 = vsub.f32 %v693, %v767
  %v784 = vsub.f32 %v698, %v768
  %v785 = vsub.f32 %v703, %v769
  %v786 = vmul.f32 %v770, %v770
  %v787 = vmul.f32 %v771, %v771
  %v788 = vmul.f32 %v772, %v772
  %v789 = vmul.f32 %v773, %v773
  %v790 = vmul.f32 %v774, %v774
  %v791 = vmul.f32 %v775, %v775
  %v792 = vmul.f32 %v776, %v776
  %v793 = vmul.f32 %v777, %v777
  %v794 = vmul.f32 %v778, %v778
  %v795 = vmul.f32 %v779, %v779
  %v796 = vmul.f32 %v780, %v780
  %v797 = vmul.f32 %v781, %v781
  %v798 = vmul.f32 %v782, %v782
  %v799 = vmul.f32 %v783, %v783
  %v800 = vmul.f32 %v784, %v784
  %v801 = vmul.f32 %v785, %v785
  %v802 = vsel %vm45, %v786, 0.0
  %803 = vadd.xlane.f32.xlu0 %v802
  %v804 = vpop.xlane.xlu0 %803
  %v805 = vsel %vm45, %v787, 0.0
  %806 = vadd.xlane.f32.xlu0 %v805
  %v807 = vpop.xlane.xlu0 %806
  %v808 = vsel %vm45, %v788, 0.0
  %809 = vadd.xlane.f32.xlu0 %v808
  %v810 = vpop.xlane.xlu0 %809
  %v811 = vsel %vm45, %v789, 0.0
  %812 = vadd.xlane.f32.xlu0 %v811
  %v813 = vpop.xlane.xlu0 %812
  %v814 = vsel %vm45, %v790, 0.0
  %815 = vadd.xlane.f32.xlu0 %v814
  %v816 = vpop.xlane.xlu0 %815
  %v817 = vsel %vm45, %v791, 0.0
  %818 = vadd.xlane.f32.xlu0 %v817
  %v819 = vpop.xlane.xlu0 %818
  %v820 = vsel %vm45, %v792, 0.0
  %821 = vadd.xlane.f32.xlu0 %v820
  %v822 = vpop.xlane.xlu0 %821
  %v823 = vsel %vm45, %v793, 0.0
  %824 = vadd.xlane.f32.xlu0 %v823
  %v825 = vpop.xlane.xlu0 %824
  %v826 = vsel %vm45, %v794, 0.0
  %827 = vadd.xlane.f32.xlu0 %v826
  %v828 = vpop.xlane.xlu0 %827
  %v829 = vsel %vm45, %v795, 0.0
  %830 = vadd.xlane.f32.xlu0 %v829
  %v831 = vpop.xlane.xlu0 %830
  %v832 = vsel %vm45, %v796, 0.0
  %833 = vadd.xlane.f32.xlu0 %v832
  %v834 = vpop.xlane.xlu0 %833
  %v835 = vsel %vm45, %v797, 0.0
  %836 = vadd.xlane.f32.xlu0 %v835
  %v837 = vpop.xlane.xlu0 %836
  %v838 = vsel %vm45, %v798, 0.0
  %839 = vadd.xlane.f32.xlu0 %v838
  %v840 = vpop.xlane.xlu0 %839
  %v841 = vsel %vm45, %v799, 0.0
  %842 = vadd.xlane.f32.xlu0 %v841
  %v843 = vpop.xlane.xlu0 %842
  %v844 = vsel %vm45, %v800, 0.0
  %845 = vadd.xlane.f32.xlu0 %v844
  %v846 = vpop.xlane.xlu0 %845
  %v847 = vsel %vm45, %v801, 0.0
  %848 = vadd.xlane.f32.xlu0 %v847
  %v849 = vpop.xlane.xlu0 %848
  %v850 = vmul.f32 %v804, %v287
  %v851 = vmul.f32 %v807, %v287
  %v852 = vmul.f32 %v810, %v287
  %v853 = vmul.f32 %v813, %v287
  %v854 = vmul.f32 %v816, %v287
  %v855 = vmul.f32 %v819, %v287
  %v856 = vmul.f32 %v822, %v287
  %v857 = vmul.f32 %v825, %v287
  %v858 = vmul.f32 %v828, %v287
  %v859 = vmul.f32 %v831, %v287
  %v860 = vmul.f32 %v834, %v287
  %v861 = vmul.f32 %v837, %v287
  %v862 = vmul.f32 %v840, %v287
  %v863 = vmul.f32 %v843, %v287
  %v864 = vmul.f32 %v846, %v287
  %v865 = vmul.f32 %v849, %v287
  %v866 = vadd.f32 %v850, 1e-08
  %v867 = vadd.f32 %v851, 1e-08
  %v868 = vadd.f32 %v852, 1e-08
  %v869 = vadd.f32 %v853, 1e-08
  %v870 = vadd.f32 %v854, 1e-08
  %v871 = vadd.f32 %v855, 1e-08
  %v872 = vadd.f32 %v856, 1e-08
  %v873 = vadd.f32 %v857, 1e-08
  %v874 = vadd.f32 %v858, 1e-08
  %v875 = vadd.f32 %v859, 1e-08
  %v876 = vadd.f32 %v860, 1e-08
  %v877 = vadd.f32 %v861, 1e-08
  %v878 = vadd.f32 %v862, 1e-08
  %v879 = vadd.f32 %v863, 1e-08
  %v880 = vadd.f32 %v864, 1e-08
  %v881 = vadd.f32 %v865, 1e-08
  %v882 = vrsqrt.pop %v866
  %v883 = vrsqrt.pop %v867
  %v884 = vrsqrt.pop %v868
  %v885 = vrsqrt.pop %v869
  %v886 = vrsqrt.pop %v870
  %v887 = vrsqrt.pop %v871
  %v888 = vrsqrt.pop %v872
  %v889 = vrsqrt.pop %v873
  %v890 = vrsqrt.pop %v874
  %v891 = vrsqrt.pop %v875
  %v892 = vrsqrt.pop %v876
  %v893 = vrsqrt.pop %v877
  %v894 = vrsqrt.pop %v878
  %v895 = vrsqrt.pop %v879
  %v896 = vrsqrt.pop %v880
  %v897 = vrsqrt.pop %v881
  %v898 = vmul.f32 %v770, %v882
  %v899 = vmul.f32 %v771, %v883
  %v900 = vmul.f32 %v772, %v884
  %v901 = vmul.f32 %v773, %v885
  %v902 = vmul.f32 %v774, %v886
  %v903 = vmul.f32 %v775, %v887
  %v904 = vmul.f32 %v776, %v888
  %v905 = vmul.f32 %v777, %v889
  %v906 = vmul.f32 %v778, %v890
  %v907 = vmul.f32 %v779, %v891
  %v908 = vmul.f32 %v780, %v892
  %v909 = vmul.f32 %v781, %v893
  %v910 = vmul.f32 %v782, %v894
  %v911 = vmul.f32 %v783, %v895
  %v912 = vmul.f32 %v784, %v896
  %v913 = vmul.f32 %v785, %v897
  %v914 = vlaneseq
  %v915 = vshrl.u32 %v914, 7
  %v916 = vsub.s32 4, %v915
  %v917 = vrot.slane %v36, %v916
  %v918 = vmul.f32 %v898, %v917
  %v919 = vmul.f32 %v899, %v917
  %v920 = vmul.f32 %v900, %v917
  %v921 = vmul.f32 %v901, %v917
  %v922 = vmul.f32 %v902, %v917
  %v923 = vmul.f32 %v903, %v917
  %v924 = vmul.f32 %v904, %v917
  %v925 = vmul.f32 %v905, %v917
  %v926 = vmul.f32 %v906, %v917
  %v927 = vmul.f32 %v907, %v917
  %v928 = vmul.f32 %v908, %v917
  %v929 = vmul.f32 %v909, %v917
  %v930 = vmul.f32 %v910, %v917
  %v931 = vmul.f32 %v911, %v917
  %v932 = vmul.f32 %v912, %v917
  %v933 = vmul.f32 %v913, %v917
  %v934 = vlaneseq
  %v935 = vshrl.u32 %v934, 7
  %v936 = vsub.s32 5, %v935
  %v937 = vrot.slane %v36, %v936
  %v938 = vadd.f32 %v918, %v937
  %v939 = vadd.f32 %v919, %v937
  %v940 = vadd.f32 %v920, %v937
  %v941 = vadd.f32 %v921, %v937
  %v942 = vadd.f32 %v922, %v937
  %v943 = vadd.f32 %v923, %v937
  %v944 = vadd.f32 %v924, %v937
  %v945 = vadd.f32 %v925, %v937
  %v946 = vadd.f32 %v926, %v937
  %v947 = vadd.f32 %v927, %v937
  %v948 = vadd.f32 %v928, %v937
  %v949 = vadd.f32 %v929, %v937
  %v950 = vadd.f32 %v930, %v937
  %v951 = vadd.f32 %v931, %v937
  %v952 = vadd.f32 %v932, %v937
  %v953 = vadd.f32 %v933, %v937
  %v954 = vadd.f32 %v938, %v488
  %v955 = vadd.f32 %v939, %v489
  %v956 = vadd.f32 %v940, %v490
  %v957 = vadd.f32 %v941, %v491
  %v958 = vadd.f32 %v942, %v492
  %v959 = vadd.f32 %v943, %v493
  %v960 = vadd.f32 %v944, %v494
  %v961 = vadd.f32 %v945, %v495
  %v962 = vadd.f32 %v946, %v496
  %v963 = vadd.f32 %v947, %v497
  %v964 = vadd.f32 %v948, %v498
  %v965 = vadd.f32 %v949, %v499
  %v966 = vadd.f32 %v950, %v500
  %v967 = vadd.f32 %v951, %v501
  %v968 = vadd.f32 %v952, %v502
  %v969 = vadd.f32 %v953, %v503
  %v970 = vld [vmem:[%s3] sm:$0xff]
  %v971 = vld [vmem:[%s4] sm:$0xff]
  %973 = vset.pattern.permute.xlu0 0
  %974 = vperm.xlu0 %973, %v971
  %v975 = vpop.permute.xlu0 %974
  %v978 = vsel %vm45, %v970, 0
  %v981 = vsel %vm45, %v954, 0
  %v984 = vsel %vm45, %v955, 0
  %v987 = vsel %vm45, %v956, 0
  %v990 = vsel %vm45, %v957, 0
  %v993 = vsel %vm45, %v958, 0
  %v996 = vsel %vm45, %v959, 0
  %v999 = vsel %vm45, %v960, 0
  %v1002 = vsel %vm45, %v961, 0
  %v1005 = vsel %vm45, %v962, 0
  %v1008 = vsel %vm45, %v963, 0
  %v1011 = vsel %vm45, %v964, 0
  %v1014 = vsel %vm45, %v965, 0
  %v1017 = vsel %vm45, %v966, 0
  %v1020 = vsel %vm45, %v967, 0
  %v1023 = vsel %vm45, %v968, 0
  %v1026 = vsel %vm45, %v969, 0
  %1028 = vmatprep.subr.mxu0 0.0
  %1029 = vmatpush1.xpose.msra.mxu0 %v981
  %1030 = vmatprep.subr.mxu0 0.0
  %1031 = vmatpush1.xpose.msra.mxu0 %v984
  %1032 = vmatprep.subr.mxu0 0.0
  %1033 = vmatpush1.xpose.msra.mxu0 %v987
  %1034 = vmatprep.subr.mxu0 0.0
  %1035 = vmatpush1.xpose.msra.mxu0 %v990
  %1036 = vmatprep.subr.mxu0 0.0
  %1037 = vmatpush1.xpose.msra.mxu0 %v993
  %1038 = vmatprep.subr.mxu0 0.0
  %1039 = vmatpush1.xpose.msra.mxu0 %v996
  %1040 = vmatprep.subr.mxu0 0.0
  %1041 = vmatpush1.xpose.msra.mxu0 %v999
  %1042 = vmatprep.subr.mxu0 0.0
  %1043 = vmatpush1.xpose.msra.mxu0 %v1002
  %1044 = vmatprep.subr.mxu0 0.0
  %1045 = vmatpush1.xpose.msra.mxu0 %v1005
  %1046 = vmatprep.subr.mxu0 0.0
  %1047 = vmatpush1.xpose.msra.mxu0 %v1008
  %1048 = vmatprep.subr.mxu0 0.0
  %1049 = vmatpush1.xpose.msra.mxu0 %v1011
  %1050 = vmatprep.subr.mxu0 0.0
  %1051 = vmatpush1.xpose.msra.mxu0 %v1014
  %1052 = vmatprep.subr.mxu0 0.0
  %1053 = vmatpush1.xpose.msra.mxu0 %v1017
  %1054 = vmatprep.subr.mxu0 0.0
  %1055 = vmatpush1.xpose.msra.mxu0 %v1020
  %1056 = vmatprep.subr.mxu0 0.0
  %1057 = vmatpush1.xpose.msra.mxu0 %v1023
  %1058 = vmatprep.subr.mxu0 0.0
  %1059 = vmatpush1.xpose.msra.mxu0 %v1026
  %1060 = vmatprep.subr.mxu0 0.0
  %1061 = vmatpush1.xpose.msra.mxu0 0.0
  %1062 = vmatprep.subr.mxu0 0.0
  %1063 = vmatpush1.xpose.msra.mxu0 0.0
  %1064 = vmatprep.subr.mxu0 0.0
  %1065 = vmatpush1.xpose.msra.mxu0 0.0
  %1066 = vmatprep.subr.mxu0 0.0
  %1067 = vmatpush1.xpose.msra.mxu0 0.0
  %1068 = vmatprep.subr.mxu0 0.0
  %1069 = vmatpush1.xpose.msra.mxu0 0.0
  %1070 = vmatprep.subr.mxu0 0.0
  %1071 = vmatpush1.xpose.msra.mxu0 0.0
  %1072 = vmatprep.subr.mxu0 0.0
  %1073 = vmatpush1.xpose.msra.mxu0 0.0
  %1074 = vmatprep.subr.mxu0 0.0
  %1075 = vmatpush1.xpose.msra.mxu0 0.0
  %1076 = vmatprep.subr.mxu0 0.0
  %1077 = vmatpush1.xpose.msra.mxu0 0.0
  %1078 = vmatprep.subr.mxu0 0.0
  %1079 = vmatpush1.xpose.msra.mxu0 0.0
  %1080 = vmatprep.subr.mxu0 0.0
  %1081 = vmatpush1.xpose.msra.mxu0 0.0
  %1082 = vmatprep.subr.mxu0 0.0
  %1083 = vmatpush1.xpose.msra.mxu0 0.0
  %1084 = vmatprep.subr.mxu0 0.0
  %1085 = vmatpush1.xpose.msra.mxu0 0.0
  %1086 = vmatprep.subr.mxu0 0.0
  %1087 = vmatpush1.xpose.msra.mxu0 0.0
  %1088 = vmatprep.subr.mxu0 0.0
  %1089 = vmatpush1.xpose.msra.mxu0 0.0
  %1090 = vmatprep.subr.mxu0 0.0
  %1091 = vmatpush1.xpose.msra.mxu0 0.0
  %1092 = vmatprep.mubr.f32.mxu0 0.0
  %1093 = vmatmul.mubr.f32.gmra.mrb[0].mxu0 %v978
  %v1094 = vpop.f32.mrb[0].mxu0
  %v1095 = vadd.f32 %v975, %v1094
  %v1096 = vpop.f32.mrb[0].mxu0
  %1097 = vdwg.mxu0
  %1098 = vst [vmem:[%s5] sm:$0xff] %v1095
  // Predicated region
  $region22: #{dnn_model_forward.1} parent=0 // pred_check
    _
  $region23: #{dnn_model_forward.1} parent=0 // pred_check_branch
    %1100 = sbr.rel (0) target = $region25
  $region24: #{dnn_model_forward.1} parent=0 // pred_region
    _
  $region25: #{dnn_model_forward.1} parent=0 // pred_fallthru
    _
  // Predicated region
  $region26: #{dnn_model_forward.1} parent=0 // pred_check
    _
  $region27: #{dnn_model_forward.1} parent=0 // pred_check_branch
    %1102 = sbr.rel (0) target = $region29
  $region28: #{dnn_model_forward.1} parent=0 // pred_region
    _
  $region29: #{dnn_model_forward.1} parent=0 // pred_fallthru
    _

</llo_original>
